<compile_context>
chip_gen: v6e
topology: v6e:2x2x1
jax: 0.10.0
libtpu: 0.0.40
codegen_flags: <defaults>
</compile_context>

<pallas_src>
import functools

import jax
import jax.numpy as jnp
from jax.experimental import pallas as pl
from jax.experimental.pallas import tpu as pltpu


def _device_kind():
    try:
        return jax.devices()[0].device_kind.lower()
    except Exception:
        return ""


def _default_num_parallel():
    # Megacore split only pays off on v7x (2 TensorCores per chip); on v5e/v6e
    # the "parallel" grid axis is a serial loop and just adds epilogue work.
    kind = _device_kind()
    return 2 if ("v7" in kind or "tpu7" in kind) else 1


def _max_block_bytes():
    # Per-block logits budget (double-buffered by the pipeline).
    kind = _device_kind()
    if "v5" in kind:
        return 5 * 1024 * 1024        # stay well inside v5e's 16 MiB scoped default
    if "v6" in kind:
        return 12 * 1024 * 1024       # 2x-buffered ~24 MiB, ample on v6e
    if "v7" in kind or "tpu7" in kind:
        return 10 * 1024 * 1024       # v7x: only 64 MiB VMEM per TensorCore
    return 4 * 1024 * 1024


def _focal_loss_kernel(logits_ref, targets_ref, out_ref, acc_ref,
                       *, alpha, gamma, n_total, block_n):
    p = pl.program_id(0)          # parallel chunk index (v7x megacore)
    k = pl.program_id(1)          # reduction step within the chunk
    nk = pl.num_programs(1)

    @pl.when(k == 0)
    def _():
        acc_ref[...] = jnp.zeros_like(acc_ref)

    x = logits_ref[...].astype(jnp.float32)            # (bn, C)
    t = targets_ref[...]                               # (bn, 1) int32
    tn, c = x.shape

    # Numerically-stable logsumexp pieces over the class (lane) axis.
    # 3 cross-lane reductions per block: max, sum(exp), target-logit gather.
    m = jnp.max(x, axis=-1, keepdims=True)             # (bn, 1)
    e = jnp.exp(x - m)                                 # (bn, C)
    sumexp = jnp.sum(e, axis=-1, keepdims=True)        # (bn, 1)

    class_ids = jax.lax.broadcasted_iota(jnp.int32, (tn, c), 1)
    tgt_logit = jnp.sum(jnp.where(class_ids == t, x, 0.0),
                        axis=-1, keepdims=True)        # (bn, 1)

    ce = (m - tgt_logit) + jnp.log(sumexp)             # logsumexp - target logit
    pt = jnp.exp(-ce)                                  # exact, tiny (bn,1) EUP op
    q = jnp.maximum(1.0 - pt, 0.0)                     # clamp vs pt > 1 by an ulp

    # (1 - pt)^gamma: unrolled VPU multiplies for small integer gamma.
    if float(gamma).is_integer() and 0 <= int(gamma) <= 8:
        gi = int(gamma)
        w = jnp.ones_like(q) if gi == 0 else q
        for _ in range(gi - 1):
            w = w * q
    else:
        w = jnp.power(q, float(gamma))

    focal = alpha * w * ce                             # (bn, 1)

    # Accumulate.  The row mask (iota + compare + where) only runs on blocks
    # that overlap the ragged tail or lie past it (clamped duplicate steps);
    # full blocks take the cheap path.  The mask MUST precede the acc add so
    # garbage rows (incl. NaN/Inf from exp of unspecified data) never enter
    # the running sum.
    gb = p * nk + k                                    # global block step
    is_full = (gb + 1) * block_n <= n_total

    @pl.when(is_full)
    def _():
        acc_ref[...] += focal

    @pl.when(jnp.logical_not(is_full))
    def _():
        rows = gb * block_n + jax.lax.broadcasted_iota(jnp.int32, (tn, 1), 0)
        acc_ref[...] += jnp.where(rows < n_total, focal, 0.0)

    @pl.when(k == nk - 1)
    def _():
        out_ref[...] = jnp.sum(acc_ref[...]).reshape(1, 1, 1)


def focal_loss(logits, targets, *, alpha=1.0, gamma=2.0,
               block_bytes=4 * 1024 * 1024, num_parallel=None):
    """logits: (N, C) float (f32/bf16), targets: (N,) int -> scalar f32 mean focal loss."""
    n, c = logits.shape
    itemsize = jnp.dtype(logits.dtype).itemsize

    if num_parallel is None:
        num_parallel = _default_num_parallel()

    # Bytes-based row tile: big enough to amortize the ~0.35 us per-grid-step
    # overhead, capped by a per-generation double-buffer VMEM budget.
    bb = min(int(block_bytes), _max_block_bytes())
    bn = max(8, (bb // (itemsize * c)) // 8 * 8)
    if n >= 8:
        bn = min(bn, (n // 8) * 8)     # keep bn <= n and a multiple of 8
    else:
        bn = n                         # tiny batch: one block equal to the full dim

    num_blocks = pl.cdiv(n, bn)
    num_parallel = max(1, min(int(num_parallel), num_blocks))
    k_steps = pl.cdiv(num_blocks, num_parallel)
    last_block = num_blocks - 1

    targets_2d = targets.astype(jnp.int32).reshape(n, 1)

    kernel = functools.partial(
        _focal_loss_kernel,
        alpha=float(alpha), gamma=float(gamma), n_total=n, block_n=bn,
    )

    def row_map(p, k):
        # Clamp so grid steps past the end of the batch re-read the last valid
        # block (their contribution is masked to zero inside the kernel); no
        # block index ever points outside the un-padded array.
        return (jnp.minimum(p * k_steps + k, last_block), 0)

    partials = pl.pallas_call(
        kernel,
        out_shape=jax.ShapeDtypeStruct((num_parallel, 1, 1), jnp.float32),
        grid_spec=pltpu.PrefetchScalarGridSpec(
            num_scalar_prefetch=0,
            grid=(num_parallel, k_steps),
            in_specs=[
                pl.BlockSpec((bn, c), row_map),     # logits, native dtype
                pl.BlockSpec((bn, 1), row_map),     # targets
            ],
            out_specs=pl.BlockSpec((1, 1, 1), lambda p, k: (p, 0, 0)),
            scratch_shapes=[pltpu.VMEM((bn, 1), jnp.float32)],
        ),
        compiler_params=pltpu.CompilerParams(
            # parallel batch chunks (2 TCs on v7x), sequential reduction axis
            dimension_semantics=("parallel", "arbitrary"),
            vmem_limit_bytes=32 * 1024 * 1024,
        ),
    )(logits, targets_2d)

    # Tiny cross-chunk combine + mean in the wrapper (reduction='mean').
    return jnp.sum(partials) / jnp.float32(n)


def focal_loss_ref(logits, targets, alpha=1.0, gamma=2.0):
    lse = jax.scipy.special.logsumexp(logits.astype(jnp.float32), axis=-1)
    tgt = jnp.take_along_axis(logits.astype(jnp.float32), targets[:, None], axis=-1)[:, 0]
    ce = lse - tgt
    pt = jnp.exp(-ce)
    return jnp.mean(alpha * (1.0 - pt) ** gamma * ce)


if __name__ == "__main__":
    key = jax.random.PRNGKey(0)
    k1, k2, k3, k4 = jax.random.split(key, 4)

    # Small demo shapes consistent with the module: 16 samples, 32 classes.
    N, C = 16, 32
    logits = jax.random.normal(k1, (N, C), dtype=jnp.float32)
    targets = jax.random.randint(k2, (N,), 0, C, dtype=jnp.int32)

    out = jax.block_until_ready(focal_loss(logits, targets, alpha=1.0, gamma=2.0))
    ref = focal_loss_ref(logits, targets)
    assert jnp.allclose(out, ref, rtol=1e-3, atol=1e-4), (out, ref)

    # Ragged batch (no padding): partial last block, multi-step accumulation,
    # forced 2-chunk parallel split, and the clamped index map for the extra
    # grid step (11 blocks over a (2, 6) grid).
    N2 = 1000
    logits2 = jax.random.normal(k3, (N2, C), dtype=jnp.float32)
    targets2 = jax.random.randint(k4, (N2,), 0, C, dtype=jnp.int32)
    out2 = jax.block_until_ready(
        focal_loss(logits2, targets2, alpha=1.0, gamma=2.0,
                   block_bytes=96 * C * 4, num_parallel=2))
    ref2 = focal_loss_ref(logits2, targets2)
    assert jnp.allclose(out2, ref2, rtol=1e-3, atol=1e-4), (out2, ref2)

    # bf16 logits stream at half the HBM bytes; math still runs in f32 in VMEM.
    logits3 = logits2.astype(jnp.bfloat16)
    out3 = jax.block_until_ready(focal_loss(logits3, targets2))
    ref3 = focal_loss_ref(logits3, targets2)
    assert jnp.allclose(out3, ref3, rtol=2e-3, atol=2e-3), (out3, ref3)

    print("KERNEL_OK")
</pallas_src>

<mosaic_0001>
module attributes {stable_mosaic.version = 11 : i64} {
  func.func @_focal_loss_kernel(%arg0: i32, %arg1: i32, %arg2: memref<16x32xf32, #tpu.memory_space<vmem>>, %arg3: memref<16x1xi32, #tpu.memory_space<vmem>>, %arg4: memref<1x1x1xf32, #tpu.memory_space<vmem>>, %arg5: memref<16x1xf32, #tpu.memory_space<vmem>>) attributes {dimension_semantics = [#tpu.dimension_semantics<parallel>, #tpu.dimension_semantics<arbitrary>], iteration_bounds = array<i64: 1, 1>, scalar_prefetch = 0 : i64, scratch_operands = 1 : i64, tpu.core_type = #tpu.core_type<tc>, window_params = [{transform_indices = @transform_0, window_bounds = array<i64: 16, 32>}, {transform_indices = @transform_1, window_bounds = array<i64: 16, 1>}, {transform_indices = @transform_2, window_bounds = array<i64: 1, 1, 1>}]} {
    %c0_i32 = arith.constant 0 : i32
    %0 = arith.cmpi eq, %arg1, %c0_i32 : i32
    %1 = arith.extui %0 : i1 to i32
    %c0_i32_0 = arith.constant 0 : i32
    %2 = arith.cmpi ne, %1, %c0_i32_0 : i32
    scf.if %2 {
      %cst_17 = arith.constant 0.000000e+00 : f32
      %46 = vector.broadcast %cst_17 : f32 to vector<16x1xf32>
      %c0_18 = arith.constant 0 : index
      %c0_19 = arith.constant 0 : index
      %47 = vector.load %arg5[%c0_18, %c0_19] : memref<16x1xf32, #tpu.memory_space<vmem>>, vector<16x1xf32>
      tpu.vector_store %arg5[%c0_18, %c0_19], %46 {strides = array<i32>} : memref<16x1xf32, #tpu.memory_space<vmem>>, vector<16x1xf32>,
    } else {
    }
    %c0 = arith.constant 0 : index
    %c0_1 = arith.constant 0 : index
    %3 = vector.load %arg2[%c0, %c0_1] : memref<16x32xf32, #tpu.memory_space<vmem>>, vector<16x32xf32>
    %c0_2 = arith.constant 0 : index
    %c0_3 = arith.constant 0 : index
    %4 = vector.load %arg3[%c0_2, %c0_3] : memref<16x1xi32, #tpu.memory_space<vmem>>, vector<16x1xi32>
    %cst = arith.constant dense<0xFF800000> : vector<16xf32>
    %5 = vector.multi_reduction <maximumf>, %3, %cst [1] : vector<16x32xf32> to vector<16xf32>
    %6 = vector.shape_cast %5 : vector<16xf32> to vector<16x1xf32>
    %7 = vector.broadcast %6 : vector<16x1xf32> to vector<16x32xf32>
    %8 = arith.subf %3, %7 : vector<16x32xf32>
    %9 = math.exp %8 : vector<16x32xf32>
    %cst_4 = arith.constant dense<0.000000e+00> : vector<16xf32>
    %10 = vector.multi_reduction <add>, %9, %cst_4 [1] : vector<16x32xf32> to vector<16xf32>
    %11 = vector.shape_cast %10 : vector<16xf32> to vector<16x1xf32>
    %12 = tpu.iota {dimensions = array<i32: 1>} : vector<16x32xi32>
    %13 = vector.broadcast %4 : vector<16x1xi32> to vector<16x32xi32>
    %14 = arith.cmpi eq, %12, %13 : vector<16x32xi32>
    %cst_5 = arith.constant 0.000000e+00 : f32
    %15 = vector.broadcast %cst_5 : f32 to vector<16x32xf32>
    %16 = arith.select %14, %3, %15 : vector<16x32xi1>, vector<16x32xf32>
    %cst_6 = arith.constant dense<0.000000e+00> : vector<16xf32>
    %17 = vector.multi_reduction <add>, %16, %cst_6 [1] : vector<16x32xf32> to vector<16xf32>
    %18 = vector.shape_cast %17 : vector<16xf32> to vector<16x1xf32>
    %19 = arith.subf %6, %18 : vector<16x1xf32>
    %20 = math.log %11 : vector<16x1xf32>
    %21 = arith.addf %19, %20 : vector<16x1xf32>
    %cst_7 = arith.constant 0.000000e+00 : f32
    %22 = vector.broadcast %cst_7 : f32 to vector<16x1xf32>
    %23 = arith.subf %22, %21 : vector<16x1xf32>
    %24 = math.exp %23 : vector<16x1xf32>
    %cst_8 = arith.constant 1.000000e+00 : f32
    %25 = vector.broadcast %cst_8 : f32 to vector<16x1xf32>
    %26 = arith.subf %25, %24 : vector<16x1xf32>
    %cst_9 = arith.constant 0.000000e+00 : f32
    %27 = vector.broadcast %cst_9 : f32 to vector<16x1xf32>
    %28 = arith.maximumf %26, %27 : vector<16x1xf32>
    %29 = arith.mulf %28, %28 : vector<16x1xf32>
    %cst_10 = arith.constant 1.000000e+00 : f32
    %30 = vector.broadcast %cst_10 : f32 to vector<16x1xf32>
    %31 = arith.mulf %30, %29 : vector<16x1xf32>
    %32 = arith.mulf %31, %21 : vector<16x1xf32>
    %c1_i32 = arith.constant 1 : i32
    %33 = arith.muli %arg0, %c1_i32 : i32
    %34 = arith.addi %33, %arg1 : i32
    %c1_i32_11 = arith.constant 1 : i32
    %35 = arith.addi %34, %c1_i32_11 : i32
    %c16_i32 = arith.constant 16 : i32
    %36 = arith.muli %35, %c16_i32 : i32
    %c16_i32_12 = arith.constant 16 : i32
    %37 = arith.cmpi sle, %36, %c16_i32_12 : i32
    %38 = arith.extui %37 : i1 to i32
    %c0_i32_13 = arith.constant 0 : i32
    %39 = arith.cmpi ne, %38, %c0_i32_13 : i32
    scf.if %39 {
      %c0_17 = arith.constant 0 : index
      %c0_18 = arith.constant 0 : index
      %46 = vector.load %arg5[%c0_17, %c0_18] : memref<16x1xf32, #tpu.memory_space<vmem>>, vector<16x1xf32>
      %47 = arith.addf %46, %32 : vector<16x1xf32>
      %c0_19 = arith.constant 0 : index
      %c0_20 = arith.constant 0 : index
      %48 = vector.load %arg5[%c0_19, %c0_20] : memref<16x1xf32, #tpu.memory_space<vmem>>, vector<16x1xf32>
      tpu.vector_store %arg5[%c0_19, %c0_20], %47 {strides = array<i32>} : memref<16x1xf32, #tpu.memory_space<vmem>>, vector<16x1xf32>,
    } else {
    }
    %true = arith.constant true
    %40 = arith.xori %37, %true : i1
    %41 = arith.extui %40 : i1 to i32
    %c0_i32_14 = arith.constant 0 : i32
    %42 = arith.cmpi ne, %41, %c0_i32_14 : i32
    scf.if %42 {
      %c16_i32_17 = arith.constant 16 : i32
      %46 = arith.muli %34, %c16_i32_17 : i32
      %47 = tpu.iota {dimensions = array<i32: 0>} : vector<16x1xi32>
      %48 = vector.broadcast %46 : i32 to vector<16x1xi32>
      %49 = arith.addi %48, %47 : vector<16x1xi32>
      %c0_18 = arith.constant 0 : index
      %c0_19 = arith.constant 0 : index
      %50 = vector.load %arg5[%c0_18, %c0_19] : memref<16x1xf32, #tpu.memory_space<vmem>>, vector<16x1xf32>
      %c16_i32_20 = arith.constant 16 : i32
      %51 = vector.broadcast %c16_i32_20 : i32 to vector<16x1xi32>
      %52 = arith.cmpi slt, %49, %51 : vector<16x1xi32>
      %cst_21 = arith.constant 0.000000e+00 : f32
      %53 = vector.broadcast %cst_21 : f32 to vector<16x1xf32>
      %54 = arith.select %52, %32, %53 : vector<16x1xi1>, vector<16x1xf32>
      %55 = arith.addf %50, %54 : vector<16x1xf32>
      %c0_22 = arith.constant 0 : index
      %c0_23 = arith.constant 0 : index
      %56 = vector.load %arg5[%c0_22, %c0_23] : memref<16x1xf32, #tpu.memory_space<vmem>>, vector<16x1xf32>
      tpu.vector_store %arg5[%c0_22, %c0_23], %55 {strides = array<i32>} : memref<16x1xf32, #tpu.memory_space<vmem>>, vector<16x1xf32>,
    } else {
    }
    %c0_i32_15 = arith.constant 0 : i32
    %43 = arith.cmpi eq, %arg1, %c0_i32_15 : i32
    %44 = arith.extui %43 : i1 to i32
    %c0_i32_16 = arith.constant 0 : i32
    %45 = arith.cmpi ne, %44, %c0_i32_16 : i32
    scf.if %45 {
      %c0_17 = arith.constant 0 : index
      %c0_18 = arith.constant 0 : index
      %46 = vector.load %arg5[%c0_17, %c0_18] : memref<16x1xf32, #tpu.memory_space<vmem>>, vector<16x1xf32>
      %47 = vector.shape_cast %46 : vector<16x1xf32> to vector<1x16x1xf32>
      %cst_19 = arith.constant dense<0.000000e+00> : vector<1xf32>
      %48 = vector.multi_reduction <add>, %47, %cst_19 [1, 2] : vector<1x16x1xf32> to vector<1xf32>
      %49 = vector.shape_cast %48 : vector<1xf32> to vector<1x1x1xf32>
      %50 = vector.extract %49[0, 0, 0] : f32 from vector<1x1x1xf32>
      %51 = vector.broadcast %50 : f32 to vector<1x1x1xf32>
      %c0_20 = arith.constant 0 : index
      %c0_21 = arith.constant 0 : index
      %c0_22 = arith.constant 0 : index
      %52 = vector.load %arg4[%c0_20, %c0_21, %c0_22] : memref<1x1x1xf32, #tpu.memory_space<vmem>>, vector<1x1x1xf32>
      tpu.vector_store %arg4[%c0_20, %c0_21, %c0_22], %51 {strides = array<i32>} : memref<1x1x1xf32, #tpu.memory_space<vmem>>, vector<1x1x1xf32>,
    } else {
    }
    return
  }
  func.func @transform_0(%arg0: i32, %arg1: i32) -> (i32, i32) {
    %c1_i32 = arith.constant 1 : i32
    %0 = arith.muli %arg0, %c1_i32 : i32
    %1 = arith.addi %0, %arg1 : i32
    %c0_i32 = arith.constant 0 : i32
    %2 = arith.minsi %1, %c0_i32 : i32
    %c0_i32_0 = arith.constant 0 : i32
    %c0_i32_1 = arith.constant 0 : i32
    return %2, %c0_i32_0 : i32, i32
  }
  func.func @transform_1(%arg0: i32, %arg1: i32) -> (i32, i32) {
    %c1_i32 = arith.constant 1 : i32
    %0 = arith.muli %arg0, %c1_i32 : i32
    %1 = arith.addi %0, %arg1 : i32
    %c0_i32 = arith.constant 0 : i32
    %2 = arith.minsi %1, %c0_i32 : i32
    %c0_i32_0 = arith.constant 0 : i32
    %c0_i32_1 = arith.constant 0 : i32
    return %2, %c0_i32_0 : i32, i32
  }
  func.func @transform_2(%arg0: i32, %arg1: i32) -> (i32, i32, i32) {
    %c0_i32 = arith.constant 0 : i32
    %c0_i32_0 = arith.constant 0 : i32
    %c0_i32_1 = arith.constant 0 : i32
    return %arg0, %c0_i32, %c0_i32_0 : i32, i32, i32
  }
}

</mosaic_0001>

<llo_original>
// kernel: tpu_custom_call.1
$region0: #{tpu_custom_call.1}
  #allocation0 [shape = 'u32[]', space=smem, size = 0x4, offset = 0x4, fixed_abs, tag = 'smem constant byte address 0x4 - core index']
  #allocation1 [shape = 'u32[144,128]{1,0:T(1,128)}', space=vmem, size = 0x12000, scoped, tag = 'internal scratch']
  #allocation2 [shape = 'f32[16,1]{1,0:T(8,128)}', space=vmem, size = 0x2000, scoped, tag = 'scratch operand']
  %s0 = inlined_call_operand.vmem [shape: f32[16,32], index: 0, kind: input, shape index: {}]
  %s1 = inlined_call_operand.vmem [shape: s32[16,1], index: 1, kind: input, shape index: {}]
  %s2 = inlined_call_operand.hbm [shape: f32[1,1,1], index: 2, kind: output, shape index: {}]
  %s3 = sld [smem:[#allocation0]]
  $region34: #{tpu_custom_call.1} parent=0
    _
  %s5 = ssub.s32 1, %s3
  %s6 = scalar_select 0, %s5, %s3
  $region1: #{tpu_custom_call.1} parent=0
    #allocation3 [shape = 'u8[512]{0}', space=vmem, size = 0x400, scoped, tag = 'output window, operand 0, single buffered']
    #allocation4 [shape = 's32[1]{0}', space=sflag, size = 0x4, scoped, tag = 'scoped memory for tpu_custom_call.1']
    %7 = vsyncpa [#allocation4], 0
    // Predicated region
    $region2: #{tpu_custom_call.1} parent=1 // pred_check
      _
    $region3: #{tpu_custom_call.1} parent=1 // pred_check_branch
      %9 = sbr.rel (0) target = $region5
    $region4: #{tpu_custom_call.1} parent=1 // pred_region
      %s10 = sadd.s32 0, 0
      %p11 = scmp.lt.s32.totalorder %s10, 0
      %s12 = scalar_select %p11, %s10, 0
      %s13 = smul.u32 2, %s12
      %p14 = scmp.lt.s32.totalorder %s13, 1
      %s15 = scalar_select %p14, %s13, 1
      %s16 = smul.addr %s15, 8
      %s17 = scalar_lea.vmem %s0, %s16
      %s18 = sadd.s32 0, 0
      %p19 = scmp.lt.s32.totalorder %s18, 0
      %s20 = scalar_select %p19, %s18, 0
      %s21 = smul.u32 2, %s20
    $region5: #{tpu_custom_call.1} parent=1 // pred_fallthru
      _
    // Predicated region
    $region6: #{tpu_custom_call.1} parent=1 // pred_check
      _
    $region7: #{tpu_custom_call.1} parent=1 // pred_check_branch
      %23 = sbr.rel (0) target = $region9
    $region8: #{tpu_custom_call.1} parent=1 // pred_region
      %s24 = sadd.s32 0, 0
      %p25 = scmp.lt.s32.totalorder %s24, 0
      %s26 = scalar_select %p25, %s24, 0
      %s27 = smul.u32 2, %s26
      %p28 = scmp.lt.s32.totalorder %s27, 1
      %s29 = scalar_select %p28, %s27, 1
      %s30 = smul.addr %s29, 8
      %s31 = scalar_lea.vmem %s1, %s30
      %s32 = sadd.s32 0, 0
      %p33 = scmp.lt.s32.totalorder %s32, 0
      %s34 = scalar_select %p33, %s32, 0
      %s35 = smul.u32 2, %s34
    $region9: #{tpu_custom_call.1} parent=1 // pred_fallthru
      _
    %s36 = sadd.s32 0, 0
    %p37 = scmp.lt.s32.totalorder %s36, 0
    %s38 = scalar_select %p37, %s36, 0
    %s39 = smul.u32 2, %s38
    %p40 = scmp.lt.s32.totalorder %s39, 1
    %s41 = scalar_select %p40, %s39, 1
    %s42 = smul.addr %s41, 8
    %s43 = scalar_lea.vmem %s0, %s42
    %s44 = sadd.s32 0, 0
    %p45 = scmp.lt.s32.totalorder %s44, 0
    %s46 = scalar_select %p45, %s44, 0
    %s47 = smul.u32 2, %s46
    %p48 = scmp.lt.s32.totalorder %s47, 1
    %s49 = scalar_select %p48, %s47, 1
    %s50 = smul.addr %s49, 8
    %s51 = scalar_lea.vmem %s1, %s50
    %s52 = sadd.s32 0, 0
    %p53 = scmp.lt.s32.totalorder %s52, 0
    %s54 = scalar_select %p53, %s52, 0
    %s55 = smul.u32 2, %s54
    %p56 = scmp.lt.s32.totalorder %s55, 1
    %s57 = scalar_select %p56, %s55, 1
    %s58 = smul.addr %s57, 8
    %s59 = scalar_lea.vmem %s0, %s58
    %s60 = sadd.s32 0, 0
    %p61 = scmp.lt.s32.totalorder %s60, 0
    %s62 = scalar_select %p61, %s60, 0
    %s63 = smul.u32 2, %s62
    %s64 = sadd.s32 0, 0
    %p65 = scmp.lt.s32.totalorder %s64, 0
    %s66 = scalar_select %p65, %s64, 0
    %s67 = smul.u32 2, %s66
    %p68 = scmp.lt.s32.totalorder %s67, 1
    %s69 = scalar_select %p68, %s67, 1
    %s70 = smul.addr %s69, 8
    %s71 = scalar_lea.vmem %s1, %s70
    %s72 = sadd.s32 0, 0
    %p73 = scmp.lt.s32.totalorder %s72, 0
    %s74 = scalar_select %p73, %s72, 0
    %s75 = smul.u32 2, %s74
    %p76 = scmp.eq.s32.totalorder 0, 0
    // Predicated region
    $region10: #{tpu_custom_call.1} parent=1 // pred_check
      %p77 = pneg %p76
    $region11: #{tpu_custom_call.1} parent=1 // pred_check_branch
      %79 = sbr.rel (%p77) target = $region13
    $region12: #{tpu_custom_call.1} parent=1 // pred_region
      %vm80 = vcmask 7168
      %81 = vst.msk [vmem:[#allocation2] sm:$0xff] %vm80, 0.0
      %82 = vst.msk [vmem:[#allocation2 + $0x8] sm:$0xff] %vm80, 0.0
    $region13: #{tpu_custom_call.1} parent=1 // pred_fallthru
      _
    %v83 = vld [vmem:[%s59] sm:$0xff]
    %v84 = vld [vmem:[%s59 + $0x8] sm:$0xff]
    %v85 = vld [vmem:[%s71] sm:$0xff]
    %v86 = vld [vmem:[%s71 + $0x8] sm:$0xff]
    %vm87 = vcmask 261120
    %v88 = vsel %vm87, %v83, -inf
    %89 = vmax.xlane.f32.xlu0 %v88
    %v90 = vpop.xlane.xlu0 %89
    %v91 = vsel %vm87, %v84, -inf
    %92 = vmax.xlane.f32.xlu0 %v91
    %v93 = vpop.xlane.xlu0 %92
    %v94 = vsub.f32 %v83, %v90
    %v95 = vsub.f32 %v84, %v93
    %v96 = vmul.f32 %v94, 1.442695
    %v97 = vpow.pop %v96
    %v98 = vmul.f32 %v95, 1.442695
    %v99 = vpow.pop %v98
    %v100 = vsel %vm87, %v97, 0.0
    %101 = vadd.xlane.f32.xlu0 %v100
    %v102 = vpop.xlane.xlu0 %101
    %v103 = vsel %vm87, %v99, 0.0
    %104 = vadd.xlane.f32.xlu0 %v103
    %v105 = vpop.xlane.xlu0 %104
    %v106 = vlaneseq
    %v107 = vand.u32 %v106, 127
    %108 = vset.pattern.permute.xlu0 0
    %109 = vperm.xlu0 %108, %v85
    %v110 = vpop.permute.xlu0 %109
    %111 = vset.pattern.permute.xlu0 0
    %112 = vperm.xlu0 %111, %v86
    %v113 = vpop.permute.xlu0 %112
    %vm114 = vcmp.eq.s32.totalorder %v107, %v110
    %vm115 = vcmp.eq.s32.totalorder %v107, %v113
    %v116 = vsel %vm114, %v83, 0.0
    %v117 = vsel %vm115, %v84, 0.0
    %v118 = vsel %vm87, %v116, 0.0
    %119 = vadd.xlane.f32.xlu0 %v118
    %v120 = vpop.xlane.xlu0 %119
    %v121 = vsel %vm87, %v117, 0.0
    %122 = vadd.xlane.f32.xlu0 %v121
    %v123 = vpop.xlane.xlu0 %122
    %v124 = vsub.f32 %v90, %v120
    %v125 = vsub.f32 %v93, %v123
    %v126 = vlog2.pop %v102
    %v127 = vmul.f32 %v126, 0.6931472
    %v128 = vlog2.pop %v105
    %v129 = vmul.f32 %v128, 0.6931472
    %v130 = vadd.f32 %v124, %v127
    %v131 = vadd.f32 %v125, %v129
    %v132 = vsub.f32 0.0, %v130
    %v133 = vsub.f32 0.0, %v131
    %v134 = vmul.f32 %v132, 1.442695
    %v135 = vpow.pop %v134
    %v136 = vmul.f32 %v133, 1.442695
    %v137 = vpow.pop %v136
    %v138 = vsub.f32 1.0, %v135
    %v139 = vsub.f32 1.0, %v137
    %v140 = vmax.f32 %v138, 0.0
    %v141 = vmax.f32 %v139, 0.0
    %v142 = vmul.f32 %v140, %v140
    %v143 = vmul.f32 %v141, %v141
    %v144 = vmul.f32 %v142, %v130
    %v145 = vmul.f32 %v143, %v131
    %s146 = sadd.s32 0, 0
    %s147 = sadd.s32 %s146, 1
    %s148 = smul.u32 %s147, 16
    %p149 = scmp.le.s32.totalorder %s148, 16
    // Predicated region
    $region14: #{tpu_custom_call.1} parent=1 // pred_check
      %p150 = pneg %p149
    $region15: #{tpu_custom_call.1} parent=1 // pred_check_branch
      %152 = sbr.rel (%p150) target = $region17
    $region16: #{tpu_custom_call.1} parent=1 // pred_region
      %v153 = vld [vmem:[#allocation2] sm:$0xff]
      %v154 = vld [vmem:[#allocation2 + $0x8] sm:$0xff]
      %v155 = vadd.f32 %v153, %v144
      %v156 = vadd.f32 %v154, %v145
      %vm157 = vcmask 7168
      %158 = vst.msk [vmem:[#allocation2] sm:$0xff] %vm157, %v155
      %159 = vst.msk [vmem:[#allocation2 + $0x8] sm:$0xff] %vm157, %v156
    $region17: #{tpu_custom_call.1} parent=1 // pred_fallthru
      _
    %p160 = scmp.gt.s32.totalorder %s148, 16
    // Predicated region
    $region18: #{tpu_custom_call.1} parent=1 // pred_check
      %p161 = pneg %p160
    $region19: #{tpu_custom_call.1} parent=1 // pred_check_branch
      %163 = sbr.rel (%p161) target = $region21
    $region20: #{tpu_custom_call.1} parent=1 // pred_region
      %s164 = smul.u32 %s146, 16
      %v165 = vlaneseq
      %v166 = vshrl.u32 %v165, 7
      %v167 = vadd.s32 %v166, 8
      %v168 = vstv %s164
      %v169 = vadd.s32 %v168, %v166
      %v170 = vadd.s32 %v168, %v167
      %v171 = vld [vmem:[#allocation2] sm:$0xff]
      %v172 = vld [vmem:[#allocation2 + $0x8] sm:$0xff]
      %vm173 = vcmp.lt.s32.totalorder %v169, 16
      %vm174 = vcmp.lt.s32.totalorder %v170, 16
      %v175 = vsel %vm173, %v144, 0.0
      %v176 = vsel %vm174, %v145, 0.0
      %v177 = vadd.f32 %v171, %v175
      %v178 = vadd.f32 %v172, %v176
      %vm179 = vcmask 7168
      %180 = vst.msk [vmem:[#allocation2] sm:$0xff] %vm179, %v177
      %181 = vst.msk [vmem:[#allocation2 + $0x8] sm:$0xff] %vm179, %v178
    $region21: #{tpu_custom_call.1} parent=1 // pred_fallthru
      _
    // Predicated region
    $region22: #{tpu_custom_call.1} parent=1 // pred_check
      %p182 = pneg %p76
    $region23: #{tpu_custom_call.1} parent=1 // pred_check_branch
      %184 = sbr.rel (%p182) target = $region25
    $region24: #{tpu_custom_call.1} parent=1 // pred_region
      %v185 = vld [vmem:[#allocation2] sm:$0xff]
      %v186 = vld [vmem:[#allocation2 + $0x8] sm:$0xff]
      %vm187 = vcmask 7168
      %v188 = vsel %vm187, %v185, 0.0
      %v189 = vsel %vm187, %v186, 0.0
      %v190 = vadd.f32 %v188, %v189
      %191 = vadd.xlane.f32.xlu0 %v190
      %v192 = vpop.xlane.xlu0 %191
      %v193 = vrot.slane %v192, 4
      %v194 = vadd.f32 %v192, %v193
      %v195 = vrot.slane %v194, 2
      %v196 = vadd.f32 %v194, %v195
      %v197 = vrot.slane %v196, 1
      %v198 = vadd.f32 %v196, %v197
      %s199 = vtos %v198
      %v200 = vstv %s199
      %vm201 = vcmask 0
      %202 = vst.msk [vmem:[#allocation3] sm:$0x1] %vm201, %v200
    $region25: #{tpu_custom_call.1} parent=1 // pred_fallthru
      _
    // Predicated region
    $region26: #{tpu_custom_call.1} parent=1 // pred_check
      _
    $region27: #{tpu_custom_call.1} parent=1 // pred_check_branch
      %204 = sbr.rel (0) target = $region29
    $region28: #{tpu_custom_call.1} parent=1 // pred_region
      %s206 = ssub.s32 16, 16
      %207 = vsyncadd [#allocation4], %s206
      %s209 = sshll.u32 [#allocation3], 4
      %s210 = int_to_ptr.vmem [resolvable:$true] %s209
      %212 = dma.vmem_to_hbm [thread:$0]  %s210, 16, %s2, [#allocation4]
    $region29: #{tpu_custom_call.1} parent=1 // pred_fallthru
      _
    // Predicated region
    $region30: #{tpu_custom_call.1} parent=1 // pred_check
      _
    $region31: #{tpu_custom_call.1} parent=1 // pred_check_branch
      %214 = sbr.rel (0) target = $region33
    $region32: #{tpu_custom_call.1} parent=1 // pred_region
      %215 = dma.done [#allocation4], 16
    $region33: #{tpu_custom_call.1} parent=1 // pred_fallthru
      _
    %216 = vsyncpa [#allocation4], 1

</llo_original>
